<compile_context>
chip_gen: v6e
topology: v6e:2x2x1
jax: 0.10.0
libtpu: 0.0.40
codegen_flags: <defaults>
</compile_context>

<pallas_src>
import functools

import jax
import jax.numpy as jnp
from jax.experimental import pallas as pl
from jax.experimental.pallas import tpu as pltpu

LANES = 128          # vreg lane width (last block dim)
INNER_ROWS = 512     # rows per in-kernel chunk (bounds live temporaries)
TM_MAX_FAST = 4096   # sublane rows per block on v6e/v7x  (2 MiB f32 per input buffer)
TM_MAX_SLOW = 2048   # sublane rows per block on v5e / unknown chips


def _device_kind():
    try:
        return jax.devices()[0].device_kind.lower()
    except Exception:
        return ""


def _triplet_kernel(a_ref, p_ref, n_ref, out_ref, acc_ap_ref, acc_an_ref, *,
                    rows_valid, tm, inner, num_chunks, blocks_per_split,
                    num_blocks, needs_mask):
    s = pl.program_id(0)   # core-split axis (core_parallel on v7x, size 1 elsewhere)
    i = pl.program_id(1)   # reduction axis ("arbitrary", last)

    @pl.when(i == 0)
    def _():
        acc_ap_ref[...] = jnp.zeros_like(acc_ap_ref)
        acc_an_ref[...] = jnp.zeros_like(acc_an_ref)

    virt_blk = s * blocks_per_split + i

    def accum_chunk(start_row, masked):
        sl = pl.ds(start_row, inner)
        a = a_ref[sl, :].astype(jnp.float32)
        p = p_ref[sl, :].astype(jnp.float32)
        n = n_ref[sl, :].astype(jnp.float32)
        dap = a - p
        dan = a - n
        if masked:
            # Rows past the end of the (rows_valid, 128) slab read undefined or
            # duplicated data; zero their contribution (select before squaring
            # so OOB garbage / NaN cannot leak).
            row_ids = (virt_blk * tm + start_row
                       + jax.lax.broadcasted_iota(jnp.int32, (inner, LANES), 0))
            valid = row_ids < rows_valid
            dap = jnp.where(valid, dap, 0.0)
            dan = jnp.where(valid, dan, 0.0)
        # Fold the (inner, 128) squared diffs into a single (8, 128) vreg with a
        # tile-aligned reshape + axis-0 sum (pure VALU adds), then accumulate.
        acc_ap_ref[...] += jnp.sum((dap * dap).reshape(inner // 8, 8, LANES), axis=0)
        acc_an_ref[...] += jnp.sum((dan * dan).reshape(inner // 8, 8, LANES), axis=0)

    def run(masked):
        if num_chunks == 1:
            accum_chunk(0, masked)
        else:
            def body(c, carry):
                accum_chunk(pl.multiple_of(c * inner, inner), masked)
                return carry
            jax.lax.fori_loop(0, num_chunks, body, 0)

    if needs_mask:
        # Only the last real block (and clamped past-the-end duplicates) can
        # contain invalid rows; interior blocks take the unmasked fast path.
        is_partial = virt_blk >= num_blocks - 1

        @pl.when(jnp.logical_not(is_partial))
        def _():
            run(False)

        @pl.when(is_partial)
        def _():
            run(True)
    else:
        run(False)

    @pl.when(i == pl.num_programs(1) - 1)
    def _():
        out_ref[0, 0] = jnp.sum(acc_ap_ref[...])
        out_ref[0, 1] = jnp.sum(acc_an_ref[...])


def triplet_loss(a, p, n, margin=0.2):
    # Kernel computes sum((a-p)^2) and sum((a-n)^2) over the 128-aligned bulk;
    # the scalar epilogue (tail, sqrt, margin, relu) is a few wrapper ops.
    total = a.size
    bulk = (total // LANES) * LANES
    tail = total - bulk

    a_f, p_f, n_f = jnp.ravel(a), jnp.ravel(p), jnp.ravel(n)

    def _tail_sq(x_f, y_f):
        xt = jax.lax.slice(x_f, (bulk,), (total,)).astype(jnp.float32)
        yt = jax.lax.slice(y_f, (bulk,), (total,)).astype(jnp.float32)
        d = xt - yt
        return jnp.sum(d * d)

    if bulk == 0:
        # Fewer than 128 elements: pure-JAX path (kernel would be all padding).
        ap_sq, an_sq = _tail_sq(a_f, p_f), _tail_sq(a_f, n_f)
        dist = jnp.sqrt(ap_sq) - jnp.sqrt(an_sq) + jnp.float32(margin)
        return jnp.maximum(dist, jnp.float32(0.0))

    rows = bulk // LANES
    itemsize = jnp.dtype(a.dtype).itemsize
    sub_mult = max(8, 32 // itemsize)          # packed sublane multiple (f32:8, bf16:16, i8:32)

    kind = _device_kind()
    tm_max = TM_MAX_FAST if ("v6" in kind or "v7" in kind) else TM_MAX_SLOW

    rows_small = pl.cdiv(rows, sub_mult) * sub_mult
    if rows_small <= INNER_ROWS:
        tm = rows_small                        # single small block, one chunk
        inner = tm
    else:
        tm = min(tm_max, pl.cdiv(rows, INNER_ROWS) * INNER_ROWS)
        inner = INNER_ROWS
    num_chunks = tm // inner
    num_blocks = pl.cdiv(rows, tm)

    # Only v7x has two TensorCores per chip; single-TC chips keep a 1-wide axis.
    nsplit = 2 if ("v7" in kind and num_blocks >= 2) else 1
    blocks_per_split = pl.cdiv(num_blocks, nsplit)
    virtual_blocks = nsplit * blocks_per_split
    needs_clamp = virtual_blocks > num_blocks          # uneven split across cores
    needs_mask = (virtual_blocks * tm) > rows          # tail rows / clamped blocks
    # Invariant: needs_clamp implies needs_mask (clamped re-reads are fully masked).

    def in_idx(s, i):
        blk = s * blocks_per_split + i
        if needs_clamp:
            blk = jnp.minimum(blk, num_blocks - 1)     # excess iters re-read last block
        return (blk, 0)

    def prep(x_f):
        if tail > 0:
            x_f = jax.lax.slice(x_f, (0,), (bulk,))    # 128-aligned bulk, no jnp.pad
        return jnp.reshape(x_f, (rows, LANES))

    a2, p2, n2 = prep(a_f), prep(p_f), prep(n_f)

    if nsplit > 1:
        dim_sem = (pltpu.CORE_PARALLEL, pltpu.ARBITRARY)
    else:
        dim_sem = (pltpu.ARBITRARY, pltpu.ARBITRARY)

    block_bytes = tm * LANES * itemsize
    vmem_limit = 3 * 2 * block_bytes + (8 << 20)       # dbl-buffered inputs + margin

    kernel = pl.pallas_call(
        functools.partial(
            _triplet_kernel,
            rows_valid=rows,
            tm=tm,
            inner=inner,
            num_chunks=num_chunks,
            blocks_per_split=blocks_per_split,
            num_blocks=num_blocks,
            needs_mask=needs_mask,
        ),
        out_shape=jax.ShapeDtypeStruct((nsplit, 2), jnp.float32),
        grid_spec=pltpu.PrefetchScalarGridSpec(
            num_scalar_prefetch=0,
            grid=(nsplit, blocks_per_split),
            in_specs=[
                pl.BlockSpec((tm, LANES), in_idx),
                pl.BlockSpec((tm, LANES), in_idx),
                pl.BlockSpec((tm, LANES), in_idx),
            ],
            out_specs=pl.BlockSpec((1, 2), lambda s, i: (s, 0),
                                   memory_space=pltpu.SMEM),
            scratch_shapes=[
                pltpu.VMEM((8, LANES), jnp.float32),
                pltpu.VMEM((8, LANES), jnp.float32),
            ],
        ),
        compiler_params=pltpu.CompilerParams(
            dimension_semantics=dim_sem,
            vmem_limit_bytes=vmem_limit,
        ),
        cost_estimate=pl.CostEstimate(
            flops=6 * bulk,
            transcendentals=0,
            bytes_accessed=3 * bulk * itemsize + nsplit * 8,
        ),
    )

    partial_sums = kernel(a2, p2, n2)                  # (nsplit, 2) squared sums
    ap_sq = jnp.sum(partial_sums[:, 0])
    an_sq = jnp.sum(partial_sums[:, 1])
    if tail > 0:
        ap_sq = ap_sq + _tail_sq(a_f, p_f)
        an_sq = an_sq + _tail_sq(a_f, n_f)

    dist = jnp.sqrt(ap_sq) - jnp.sqrt(an_sq) + jnp.float32(margin)
    return jnp.maximum(dist, jnp.float32(0.0))


def triplet_loss_ref(a, p, n, margin=0.2):
    dist = (
        jnp.linalg.norm(jnp.ravel((a - p).astype(jnp.float32)))
        - jnp.linalg.norm(jnp.ravel((a - n).astype(jnp.float32)))
        + margin
    )
    return jnp.maximum(dist, 0.0)


if __name__ == "__main__":
    key = jax.random.PRNGKey(0)
    loss_fn = jax.jit(functools.partial(triplet_loss, margin=0.2))

    # Spec-sized test (NCHW, 2048 elements -> single (16,128) block).
    ka, kp, kn = jax.random.split(key, 3)
    shape = (2, 4, 16, 16)
    a = jax.random.normal(ka, shape, dtype=jnp.float32)
    p = jax.random.normal(kp, shape, dtype=jnp.float32)
    n = jax.random.normal(kn, shape, dtype=jnp.float32)
    loss = jax.block_until_ready(loss_fn(a, p, n))
    ref = jax.block_until_ready(triplet_loss_ref(a, p, n, margin=0.2))
    assert jnp.allclose(loss, ref, atol=1e-5, rtol=1e-5), (loss, ref)

    # Larger test exercising the big-block / chunked inner-loop path.
    kb, kq, km = jax.random.split(jax.random.PRNGKey(1), 3)
    shape2 = (8, 32, 32, 32)   # 262144 elements -> (2048, 128) slab, 4 chunks/block
    a2 = jax.random.normal(kb, shape2, dtype=jnp.float32)
    p2 = jax.random.normal(kq, shape2, dtype=jnp.float32)
    n2 = jax.random.normal(km, shape2, dtype=jnp.float32)
    loss2 = jax.block_until_ready(loss_fn(a2, p2, n2))
    ref2 = jax.block_until_ready(triplet_loss_ref(a2, p2, n2, margin=0.2))
    assert jnp.allclose(loss2, ref2, atol=5e-3, rtol=1e-3), (loss2, ref2)

    print("KERNEL_OK")
</pallas_src>

<mosaic_0001>
module attributes {stable_mosaic.version = 11 : i64} {
  func.func @_triplet_kernel(%arg0: i32, %arg1: i32, %arg2: memref<16x128xf32, #tpu.memory_space<vmem>>, %arg3: memref<16x128xf32, #tpu.memory_space<vmem>>, %arg4: memref<16x128xf32, #tpu.memory_space<vmem>>, %arg5: memref<1x2xf32, #tpu.memory_space<smem>>, %arg6: memref<8x128xf32, #tpu.memory_space<vmem>>, %arg7: memref<8x128xf32, #tpu.memory_space<vmem>>) attributes {dimension_semantics = [#tpu.dimension_semantics<arbitrary>, #tpu.dimension_semantics<arbitrary>], iteration_bounds = array<i64: 1, 1>, scalar_prefetch = 0 : i64, scratch_operands = 2 : i64, tpu.core_type = #tpu.core_type<tc>, window_params = [{transform_indices = @transform_0, window_bounds = array<i64: 16, 128>}, {transform_indices = @transform_1, window_bounds = array<i64: 16, 128>}, {transform_indices = @transform_2, window_bounds = array<i64: 16, 128>}, {transform_indices = @transform_3, window_bounds = array<i64: 1, 2>}]} {
    %c0_i32 = arith.constant 0 : i32
    %0 = arith.cmpi eq, %arg1, %c0_i32 : i32
    %1 = arith.extui %0 : i1 to i32
    %c0_i32_0 = arith.constant 0 : i32
    %2 = arith.cmpi ne, %1, %c0_i32_0 : i32
    scf.if %2 {
      %cst_17 = arith.constant 0.000000e+00 : f32
      %23 = vector.broadcast %cst_17 : f32 to vector<8x128xf32>
      %c0_18 = arith.constant 0 : index
      %c0_19 = arith.constant 0 : index
      %24 = vector.load %arg6[%c0_18, %c0_19] : memref<8x128xf32, #tpu.memory_space<vmem>>, vector<8x128xf32>
      tpu.vector_store %arg6[%c0_18, %c0_19], %23 {strides = array<i32>} : memref<8x128xf32, #tpu.memory_space<vmem>>, vector<8x128xf32>,
      %cst_20 = arith.constant 0.000000e+00 : f32
      %25 = vector.broadcast %cst_20 : f32 to vector<8x128xf32>
      %c0_21 = arith.constant 0 : index
      %c0_22 = arith.constant 0 : index
      %26 = vector.load %arg7[%c0_21, %c0_22] : memref<8x128xf32, #tpu.memory_space<vmem>>, vector<8x128xf32>
      tpu.vector_store %arg7[%c0_21, %c0_22], %25 {strides = array<i32>} : memref<8x128xf32, #tpu.memory_space<vmem>>, vector<8x128xf32>,
    } else {
    }
    %c0 = arith.constant 0 : index
    %c0_1 = arith.constant 0 : index
    %3 = vector.load %arg2[%c0, %c0_1] : memref<16x128xf32, #tpu.memory_space<vmem>>, vector<16x128xf32>
    %c0_2 = arith.constant 0 : index
    %c0_3 = arith.constant 0 : index
    %4 = vector.load %arg3[%c0_2, %c0_3] : memref<16x128xf32, #tpu.memory_space<vmem>>, vector<16x128xf32>
    %c0_4 = arith.constant 0 : index
    %c0_5 = arith.constant 0 : index
    %5 = vector.load %arg4[%c0_4, %c0_5] : memref<16x128xf32, #tpu.memory_space<vmem>>, vector<16x128xf32>
    %6 = arith.subf %3, %4 : vector<16x128xf32>
    %7 = arith.subf %3, %5 : vector<16x128xf32>
    %c0_6 = arith.constant 0 : index
    %c0_7 = arith.constant 0 : index
    %8 = vector.load %arg6[%c0_6, %c0_7] : memref<8x128xf32, #tpu.memory_space<vmem>>, vector<8x128xf32>
    %9 = arith.mulf %6, %6 : vector<16x128xf32>
    %10 = vector.shape_cast %9 : vector<16x128xf32> to vector<2x8x128xf32>
    %cst = arith.constant dense<0.000000e+00> : vector<8x128xf32>
    %11 = vector.multi_reduction <add>, %10, %cst [0] : vector<2x8x128xf32> to vector<8x128xf32>
    %12 = arith.addf %8, %11 : vector<8x128xf32>
    %c0_8 = arith.constant 0 : index
    %c0_9 = arith.constant 0 : index
    %13 = vector.load %arg6[%c0_8, %c0_9] : memref<8x128xf32, #tpu.memory_space<vmem>>, vector<8x128xf32>
    tpu.vector_store %arg6[%c0_8, %c0_9], %12 {strides = array<i32>} : memref<8x128xf32, #tpu.memory_space<vmem>>, vector<8x128xf32>,
    %c0_10 = arith.constant 0 : index
    %c0_11 = arith.constant 0 : index
    %14 = vector.load %arg7[%c0_10, %c0_11] : memref<8x128xf32, #tpu.memory_space<vmem>>, vector<8x128xf32>
    %15 = arith.mulf %7, %7 : vector<16x128xf32>
    %16 = vector.shape_cast %15 : vector<16x128xf32> to vector<2x8x128xf32>
    %cst_12 = arith.constant dense<0.000000e+00> : vector<8x128xf32>
    %17 = vector.multi_reduction <add>, %16, %cst_12 [0] : vector<2x8x128xf32> to vector<8x128xf32>
    %18 = arith.addf %14, %17 : vector<8x128xf32>
    %c0_13 = arith.constant 0 : index
    %c0_14 = arith.constant 0 : index
    %19 = vector.load %arg7[%c0_13, %c0_14] : memref<8x128xf32, #tpu.memory_space<vmem>>, vector<8x128xf32>
    tpu.vector_store %arg7[%c0_13, %c0_14], %18 {strides = array<i32>} : memref<8x128xf32, #tpu.memory_space<vmem>>, vector<8x128xf32>,
    %c0_i32_15 = arith.constant 0 : i32
    %20 = arith.cmpi eq, %arg1, %c0_i32_15 : i32
    %21 = arith.extui %20 : i1 to i32
    %c0_i32_16 = arith.constant 0 : i32
    %22 = arith.cmpi ne, %21, %c0_i32_16 : i32
    scf.if %22 {
      %c0_17 = arith.constant 0 : index
      %c0_18 = arith.constant 0 : index
      %23 = vector.load %arg6[%c0_17, %c0_18] : memref<8x128xf32, #tpu.memory_space<vmem>>, vector<8x128xf32>
      %24 = vector.shape_cast %23 : vector<8x128xf32> to vector<1x8x128xf32>
      %cst_19 = arith.constant dense<0.000000e+00> : vector<1xf32>
      %25 = vector.multi_reduction <add>, %24, %cst_19 [1, 2] : vector<1x8x128xf32> to vector<1xf32>
      %26 = vector.shape_cast %25 : vector<1xf32> to vector<1x1x1xf32>
      %27 = vector.extract %26[0, 0, 0] : f32 from vector<1x1x1xf32>
      %c0_20 = arith.constant 0 : index
      %c0_21 = arith.constant 0 : index
      %28 = memref.load %arg5[%c0_20, %c0_21] : memref<1x2xf32, #tpu.memory_space<smem>>
      memref.store %27, %arg5[%c0_20, %c0_21] : memref<1x2xf32, #tpu.memory_space<smem>>
      %c0_22 = arith.constant 0 : index
      %c0_23 = arith.constant 0 : index
      %29 = vector.load %arg7[%c0_22, %c0_23] : memref<8x128xf32, #tpu.memory_space<vmem>>, vector<8x128xf32>
      %30 = vector.shape_cast %29 : vector<8x128xf32> to vector<1x8x128xf32>
      %cst_24 = arith.constant dense<0.000000e+00> : vector<1xf32>
      %31 = vector.multi_reduction <add>, %30, %cst_24 [1, 2] : vector<1x8x128xf32> to vector<1xf32>
      %32 = vector.shape_cast %31 : vector<1xf32> to vector<1x1x1xf32>
      %33 = vector.extract %32[0, 0, 0] : f32 from vector<1x1x1xf32>
      %c0_25 = arith.constant 0 : index
      %c1 = arith.constant 1 : index
      %34 = memref.load %arg5[%c0_25, %c1] : memref<1x2xf32, #tpu.memory_space<smem>>
      memref.store %33, %arg5[%c0_25, %c1] : memref<1x2xf32, #tpu.memory_space<smem>>
    } else {
    }
    return
  }
  func.func @transform_0(%arg0: i32, %arg1: i32) -> (i32, i32) {
    %c1_i32 = arith.constant 1 : i32
    %0 = arith.muli %arg0, %c1_i32 : i32
    %1 = arith.addi %0, %arg1 : i32
    %c0_i32 = arith.constant 0 : i32
    %c0_i32_0 = arith.constant 0 : i32
    return %1, %c0_i32 : i32, i32
  }
  func.func @transform_1(%arg0: i32, %arg1: i32) -> (i32, i32) {
    %c1_i32 = arith.constant 1 : i32
    %0 = arith.muli %arg0, %c1_i32 : i32
    %1 = arith.addi %0, %arg1 : i32
    %c0_i32 = arith.constant 0 : i32
    %c0_i32_0 = arith.constant 0 : i32
    return %1, %c0_i32 : i32, i32
  }
  func.func @transform_2(%arg0: i32, %arg1: i32) -> (i32, i32) {
    %c1_i32 = arith.constant 1 : i32
    %0 = arith.muli %arg0, %c1_i32 : i32
    %1 = arith.addi %0, %arg1 : i32
    %c0_i32 = arith.constant 0 : i32
    %c0_i32_0 = arith.constant 0 : i32
    return %1, %c0_i32 : i32, i32
  }
  func.func @transform_3(%arg0: i32, %arg1: i32) -> (i32, i32) {
    %c0_i32 = arith.constant 0 : i32
    %c0_i32_0 = arith.constant 0 : i32
    return %arg0, %c0_i32 : i32, i32
  }
}

</mosaic_0001>

<llo_original>
// kernel: triplet_loss.1
$region0: #{triplet_loss.1}
  #allocation0 [shape = 'u32[]', space=smem, size = 0x4, offset = 0x4, fixed_abs, tag = 'smem constant byte address 0x4 - core index']
  #allocation1 [shape = 'u32[144,128]{1,0:T(1,128)}', space=vmem, size = 0x12000, scoped, tag = 'internal scratch']
  #allocation2 [shape = 'f32[8,128]{1,0:T(8,128)}', space=vmem, size = 0x1000, scoped, tag = 'scratch operand']
  #allocation3 [shape = 'f32[8,128]{1,0:T(8,128)}', space=vmem, size = 0x1000, scoped, tag = 'scratch operand']
  %s0 = inlined_call_operand.vmem [shape: f32[16,128], index: 0, kind: input, shape index: {}]
  %s1 = inlined_call_operand.vmem [shape: f32[16,128], index: 1, kind: input, shape index: {}]
  %s2 = inlined_call_operand.vmem [shape: f32[16,128], index: 2, kind: input, shape index: {}]
  %s3 = inlined_call_operand.vmem [shape: f32[1,2], index: 3, kind: output, shape index: {}]
  %s4 = sld [smem:[#allocation0]]
  $region30: #{triplet_loss.1} parent=0
    _
  %s6 = ssub.s32 1, %s4
  %s7 = scalar_select 0, %s6, %s4
  $region1: #{triplet_loss.1} parent=0
    #allocation4 [shape = 'u8[512]{0}', space=smem, size = 0x200, scoped, tag = 'output window, operand 0, single buffered']
    #allocation5 [shape = 's32[1]{0}', space=sflag, size = 0x4, scoped, tag = 'scoped memory for triplet_loss.1']
    %8 = vsyncpa [#allocation5], 0
    // Predicated region
    $region2: #{triplet_loss.1} parent=1 // pred_check
      _
    $region3: #{triplet_loss.1} parent=1 // pred_check_branch
      %10 = sbr.rel (0) target = $region5
    $region4: #{triplet_loss.1} parent=1 // pred_region
      %s11 = sadd.s32 0, 0
      %s12 = smul.u32 2, %s11
      %p13 = scmp.lt.s32.totalorder %s12, 1
      %s14 = scalar_select %p13, %s12, 1
      %s15 = smul.addr %s14, 8
      %s16 = scalar_lea.vmem %s0, %s15
      %s17 = sadd.s32 0, 0
      %s18 = smul.u32 2, %s17
    $region5: #{triplet_loss.1} parent=1 // pred_fallthru
      _
    // Predicated region
    $region6: #{triplet_loss.1} parent=1 // pred_check
      _
    $region7: #{triplet_loss.1} parent=1 // pred_check_branch
      %20 = sbr.rel (0) target = $region9
    $region8: #{triplet_loss.1} parent=1 // pred_region
      %s21 = sadd.s32 0, 0
      %s22 = smul.u32 2, %s21
      %p23 = scmp.lt.s32.totalorder %s22, 1
      %s24 = scalar_select %p23, %s22, 1
      %s25 = smul.addr %s24, 8
      %s26 = scalar_lea.vmem %s1, %s25
      %s27 = sadd.s32 0, 0
      %s28 = smul.u32 2, %s27
    $region9: #{triplet_loss.1} parent=1 // pred_fallthru
      _
    // Predicated region
    $region10: #{triplet_loss.1} parent=1 // pred_check
      _
    $region11: #{triplet_loss.1} parent=1 // pred_check_branch
      %30 = sbr.rel (0) target = $region13
    $region12: #{triplet_loss.1} parent=1 // pred_region
      %s31 = sadd.s32 0, 0
      %s32 = smul.u32 2, %s31
      %p33 = scmp.lt.s32.totalorder %s32, 1
      %s34 = scalar_select %p33, %s32, 1
      %s35 = smul.addr %s34, 8
      %s36 = scalar_lea.vmem %s2, %s35
      %s37 = sadd.s32 0, 0
      %s38 = smul.u32 2, %s37
    $region13: #{triplet_loss.1} parent=1 // pred_fallthru
      _
    %s39 = sadd.s32 0, 0
    %s40 = smul.u32 2, %s39
    %p41 = scmp.lt.s32.totalorder %s40, 1
    %s42 = scalar_select %p41, %s40, 1
    %s43 = smul.addr %s42, 8
    %s44 = scalar_lea.vmem %s0, %s43
    %s45 = sadd.s32 0, 0
    %s46 = smul.u32 2, %s45
    %p47 = scmp.lt.s32.totalorder %s46, 1
    %s48 = scalar_select %p47, %s46, 1
    %s49 = smul.addr %s48, 8
    %s50 = scalar_lea.vmem %s1, %s49
    %s51 = sadd.s32 0, 0
    %s52 = smul.u32 2, %s51
    %p53 = scmp.lt.s32.totalorder %s52, 1
    %s54 = scalar_select %p53, %s52, 1
    %s55 = smul.addr %s54, 8
    %s56 = scalar_lea.vmem %s2, %s55
    %s57 = sadd.s32 0, 0
    %s58 = smul.u32 2, %s57
    %p59 = scmp.lt.s32.totalorder %s58, 1
    %s60 = scalar_select %p59, %s58, 1
    %s61 = smul.addr %s60, 8
    %s62 = scalar_lea.vmem %s0, %s61
    %s63 = sadd.s32 0, 0
    %s64 = smul.u32 2, %s63
    %s65 = sadd.s32 0, 0
    %s66 = smul.u32 2, %s65
    %p67 = scmp.lt.s32.totalorder %s66, 1
    %s68 = scalar_select %p67, %s66, 1
    %s69 = smul.addr %s68, 8
    %s70 = scalar_lea.vmem %s1, %s69
    %s71 = sadd.s32 0, 0
    %s72 = smul.u32 2, %s71
    %s73 = sadd.s32 0, 0
    %s74 = smul.u32 2, %s73
    %p75 = scmp.lt.s32.totalorder %s74, 1
    %s76 = scalar_select %p75, %s74, 1
    %s77 = smul.addr %s76, 8
    %s78 = scalar_lea.vmem %s2, %s77
    %s79 = sadd.s32 0, 0
    %s80 = smul.u32 2, %s79
    %p81 = scmp.eq.s32.totalorder 0, 0
    // Predicated region
    $region14: #{triplet_loss.1} parent=1 // pred_check
      %p82 = pneg %p81
    $region15: #{triplet_loss.1} parent=1 // pred_check_branch
      %84 = sbr.rel (%p82) target = $region17
    $region16: #{triplet_loss.1} parent=1 // pred_region
      %85 = vst [vmem:[#allocation2] sm:$0xff] 0.0
      %86 = vst [vmem:[#allocation3] sm:$0xff] 0.0
    $region17: #{triplet_loss.1} parent=1 // pred_fallthru
      _
    %v87 = vld [vmem:[%s62] sm:$0xff]
    %v88 = vld [vmem:[%s62 + $0x8] sm:$0xff]
    %v89 = vld [vmem:[%s70] sm:$0xff]
    %v90 = vld [vmem:[%s70 + $0x8] sm:$0xff]
    %v91 = vld [vmem:[%s78] sm:$0xff]
    %v92 = vld [vmem:[%s78 + $0x8] sm:$0xff]
    %v93 = vsub.f32 %v87, %v89
    %v94 = vsub.f32 %v88, %v90
    %v95 = vsub.f32 %v87, %v91
    %v96 = vsub.f32 %v88, %v92
    %v97 = vld [vmem:[#allocation2] sm:$0xff]
    %v98 = vmul.f32 %v93, %v93
    %v99 = vmul.f32 %v94, %v94
    %v100 = vadd.f32 %v98, %v99
    %v101 = vadd.f32 %v97, %v100
    %102 = vst [vmem:[#allocation2] sm:$0xff] %v101
    %v103 = vld [vmem:[#allocation3] sm:$0xff]
    %v104 = vmul.f32 %v95, %v95
    %v105 = vmul.f32 %v96, %v96
    %v106 = vadd.f32 %v104, %v105
    %v107 = vadd.f32 %v103, %v106
    %108 = vst [vmem:[#allocation3] sm:$0xff] %v107
    // Predicated region
    $region18: #{triplet_loss.1} parent=1 // pred_check
      %p109 = pneg %p81
    $region19: #{triplet_loss.1} parent=1 // pred_check_branch
      %111 = sbr.rel (%p109) target = $region21
    $region20: #{triplet_loss.1} parent=1 // pred_region
      %v112 = vld [vmem:[#allocation2] sm:$0xff]
      %113 = vadd.xlane.f32.xlu0 %v112
      %v114 = vpop.xlane.xlu0 %113
      %v115 = vrot.slane %v114, 4
      %v116 = vadd.f32 %v114, %v115
      %v117 = vrot.slane %v116, 2
      %v118 = vadd.f32 %v116, %v117
      %v119 = vrot.slane %v118, 1
      %v120 = vadd.f32 %v118, %v119
      %s121 = vtos %v120
      %s122 = scalar_lea.smem [#allocation4], 0
      %123 = sst [smem:[%s122]] %s121
      %v124 = vld [vmem:[#allocation3] sm:$0xff]
      %125 = vadd.xlane.f32.xlu0 %v124
      %v126 = vpop.xlane.xlu0 %125
      %v127 = vrot.slane %v126, 4
      %v128 = vadd.f32 %v126, %v127
      %v129 = vrot.slane %v128, 2
      %v130 = vadd.f32 %v128, %v129
      %v131 = vrot.slane %v130, 1
      %v132 = vadd.f32 %v130, %v131
      %s133 = vtos %v132
      %s134 = scalar_lea.smem [#allocation4], 1
      %135 = sst [smem:[%s134]] %s133
    $region21: #{triplet_loss.1} parent=1 // pred_fallthru
      _
    // Predicated region
    $region22: #{triplet_loss.1} parent=1 // pred_check
      _
    $region23: #{triplet_loss.1} parent=1 // pred_check_branch
      %137 = sbr.rel (0) target = $region25
    $region24: #{triplet_loss.1} parent=1 // pred_region
      %s139 = ssub.s32 16, 16
      %140 = vsyncadd [#allocation5], %s139
      %s142 = sshll.u32 %s3, 4
      %s143 = int_to_ptr.vmem [resolvable:$true] %s142
      %145 = dma.smem_to_vmem [#allocation4], 16, %s143, [#allocation5]
    $region25: #{triplet_loss.1} parent=1 // pred_fallthru
      _
    // Predicated region
    $region26: #{triplet_loss.1} parent=1 // pred_check
      _
    $region27: #{triplet_loss.1} parent=1 // pred_check_branch
      %147 = sbr.rel (0) target = $region29
    $region28: #{triplet_loss.1} parent=1 // pred_region
      %148 = dma.done [#allocation5], 16
    $region29: #{triplet_loss.1} parent=1 // pred_fallthru
      _
    %149 = sfence
    %150 = vsyncpa [#allocation5], 1

</llo_original>
